<compile_context>
chip_gen: v7x
topology: tpu7x:2x2x1
jax: 0.10.0
libtpu: 0.0.40
codegen_flags: <defaults>
</compile_context>

<pallas_src>
import functools

import jax
import jax.numpy as jnp
from jax.experimental import pallas as pl
from jax.experimental.pallas import tpu as pltpu

# YOLOv1 hyper-parameters (same defaults as the PyTorch module)
S = 7
B = 2
C = 20
LAMBDA_NOOBJ = 0.5
LAMBDA_COORD = 5.0
EPS = 1e-6
D = C + B * 5                 # 30 prediction channels per grid cell
DT = C + 5                    # 25 target channels the loss actually reads
TR_MAX = 16 * 1024            # max cells (lanes) per grid step


def _sign(x):
    return jnp.where(x > 0, 1.0, jnp.where(x < 0, -1.0, 0.0)).astype(x.dtype)


def _corners(box):
    """box: (4, T) rows = (x_c, y_c, w, h) -> (x1, y1, x2, y2), each (1, T)."""
    x, y, w, h = box[0:1, :], box[1:2, :], box[2:3, :], box[3:4, :]
    return x - w * 0.5, y - h * 0.5, x + w * 0.5, y + h * 0.5


def _inter_union(pc, lc):
    """Intersection and union area for corner tuples of (1, T) arrays."""
    px1, py1, px2, py2 = pc
    lx1, ly1, lx2, ly2 = lc
    iw = jnp.minimum(px2, lx2) - jnp.maximum(px1, lx1)
    ih = jnp.minimum(py2, ly2) - jnp.maximum(py1, ly1)
    inter = jnp.maximum(iw, 0.0) * jnp.maximum(ih, 0.0)
    area_p = jnp.abs((px2 - px1) * (py2 - py1))
    area_l = jnp.abs((lx2 - lx1) * (ly2 - ly1))
    return inter, area_p + area_l - inter


def yolo_loss_kernel(pred_ref, targ_ref, out_ref):
    # Upcast after the (possibly bf16) DMA; all math accumulates in f32.
    pred = pred_ref[...].astype(jnp.float32)     # (30, T) channels x cells
    targ = targ_ref[...].astype(jnp.float32)     # (25, T)

    # ---- channel row slices (hoisted once, reused) ----
    p_class = pred[0:C, :]               # (20, T)
    p_conf1 = pred[C:C + 1, :]           # (1, T)
    p_box1 = pred[C + 1:C + 5, :]        # (4, T)
    p_conf2 = pred[C + 5:C + 6, :]       # (1, T)
    p_box2 = pred[C + 6:C + 10, :]       # (4, T)

    t_class = targ[0:C, :]               # (20, T)
    t_conf = targ[C:C + 1, :]            # (1, T) objectness indicator
    t_box = targ[C + 1:C + 5, :]         # (4, T)

    exists = t_conf
    exists2 = exists * exists
    not_exists = 1.0 - exists
    not_exists2 = not_exists * not_exists

    # ---- responsible-box selection without the IoU divide ----
    # iou2 > iou1  <=>  inter2*(union1+eps) > inter1*(union2+eps) (unions >= 0)
    ct = _corners(t_box)
    inter1, union1 = _inter_union(_corners(p_box1), ct)
    inter2, union2 = _inter_union(_corners(p_box2), ct)
    best2 = inter2 * (union1 + EPS) > inter1 * (union2 + EPS)    # (1, T) bool

    box_p = jnp.where(best2, p_box2, p_box1)                     # (4, T)
    conf_p = jnp.where(best2, p_conf2, p_conf1)                  # (1, T)

    # ---- box xy term: exists factors out of the square ----
    d_xy = box_p[0:2, :] - t_box[0:2, :]
    sq_xy = jnp.sum(d_xy * d_xy, axis=0, keepdims=True)          # (1, T)

    # ---- box wh term: exists cannot be factored (it sits under the sqrt) ----
    wh_p = exists * box_p[2:4, :]
    wh_t = exists * t_box[2:4, :]
    d_wh = _sign(wh_p) * jnp.sqrt(jnp.abs(wh_p + EPS)) - jnp.sqrt(wh_t)
    sq_wh = jnp.sum(d_wh * d_wh, axis=0, keepdims=True)          # (1, T)

    # ---- class / object / no-object with exists factored out ----
    d_cls = p_class - t_class
    sq_class = jnp.sum(d_cls * d_cls, axis=0, keepdims=True)     # (1, T)
    d_obj = conf_p - t_conf
    d_no1 = p_conf1 - t_conf
    d_no2 = p_conf2 - t_conf

    # Zero-padded lanes contribute exactly 0: exists=0 kills the factored
    # terms, pred=targ=0 kills the no-object and wh terms.
    per_lane = (exists2 * (sq_class + LAMBDA_COORD * sq_xy + d_obj * d_obj)
                + LAMBDA_COORD * sq_wh
                + LAMBDA_NOOBJ * not_exists2 * (d_no1 * d_no1 + d_no2 * d_no2))

    # Per-tile partial (no carried accumulator, no SMEM RMW chain): one
    # cross-lane reduce per multi-microsecond tile, broadcast into this
    # tile's private lane-dense output block.
    partial = jnp.sum(per_lane, axis=1, keepdims=True)           # (1, 1)
    out_ref[...] = jnp.broadcast_to(partial, out_ref.shape)      # (1, 128)


def yolo_loss(predictions, targets, *, max_lanes_per_tile=TR_MAX):
    """predictions: (N, S*S*(C+5B)) or (N,S,S,C+5B); targets: (N,S,S,C+5B)."""
    pred2d = jnp.reshape(predictions, (-1, D))      # (R, 30)
    targ2d = jnp.reshape(targets, (-1, D))          # (R, 30)
    R = pred2d.shape[0]

    # Keep bf16 through the DMA (halves HBM bytes); anything else -> f32.
    slab_dtype = (jnp.bfloat16
                  if (pred2d.dtype == jnp.bfloat16
                      and targ2d.dtype == jnp.bfloat16)
                  else jnp.float32)

    # Tile selection: g tiles of tr lanes (tr a multiple of 128), balancing
    # tiles so lane padding stays < 128 per tile.
    g = max(1, (R + max_lanes_per_tile - 1) // max_lanes_per_tile)
    tr = (((R + g - 1) // g + 127) // 128) * 128
    r_pad = g * tr

    def to_slab(x2d, rows):
        # (R, rows) -> lane-dense (rows, r_pad); one fused transpose+pad pass.
        xt = jnp.transpose(x2d[:, :rows].astype(slab_dtype))
        return jnp.pad(xt, ((0, 0), (0, r_pad - R)))

    pred_slab = to_slab(pred2d, D)     # (30, r_pad)
    targ_slab = to_slab(targ2d, DT)    # (25, r_pad) - unused 2nd target box dropped

    itemsize = jnp.dtype(slab_dtype).itemsize
    cost = pl.CostEstimate(
        flops=int(160 * r_pad),
        transcendentals=int(4 * r_pad),
        bytes_accessed=int((D + DT) * r_pad * itemsize + 128 * g * 4))

    partials = pl.pallas_call(
        yolo_loss_kernel,
        out_shape=jax.ShapeDtypeStruct((1, 128 * g), jnp.float32),
        grid=(g,),
        in_specs=[
            pl.BlockSpec((D, tr), lambda i: (0, i)),
            pl.BlockSpec((DT, tr), lambda i: (0, i)),
        ],
        out_specs=pl.BlockSpec((1, 128), lambda i: (0, i)),
        compiler_params=pltpu.CompilerParams(
            dimension_semantics=("parallel",)),   # independent tiles -> both v7x TCs
        cost_estimate=cost,
    )(pred_slab, targ_slab)

    # One partial per tile (replicated over its 128 lanes); fixed-order sum.
    return jnp.sum(partials.reshape(g, 128)[:, 0])


# ---- pure-JAX reference (mirrors the PyTorch module) for verification ----
def _ref_loss(predictions, targets):
    pred = jnp.reshape(predictions, (-1, S, S, D)).astype(jnp.float32)
    targ = targets.astype(jnp.float32)

    def iou(bp, bl):
        b1x1 = bp[..., 0:1] - bp[..., 2:3] / 2
        b1y1 = bp[..., 1:2] - bp[..., 3:4] / 2
        b1x2 = bp[..., 0:1] + bp[..., 2:3] / 2
        b1y2 = bp[..., 1:2] + bp[..., 3:4] / 2
        b2x1 = bl[..., 0:1] - bl[..., 2:3] / 2
        b2y1 = bl[..., 1:2] - bl[..., 3:4] / 2
        b2x2 = bl[..., 0:1] + bl[..., 2:3] / 2
        b2y2 = bl[..., 1:2] + bl[..., 3:4] / 2
        inter = (jnp.maximum(jnp.minimum(b1x2, b2x2) - jnp.maximum(b1x1, b2x1), 0.0)
                 * jnp.maximum(jnp.minimum(b1y2, b2y2) - jnp.maximum(b1y1, b2y1), 0.0))
        a1 = jnp.abs((b1x2 - b1x1) * (b1y2 - b1y1))
        a2 = jnp.abs((b2x2 - b2x1) * (b2y2 - b2y1))
        return inter / (a1 + a2 - inter + EPS)

    iou_b1 = iou(pred[..., C + 1:C + 5], targ[..., C + 1:C + 5])
    iou_b2 = iou(pred[..., C + 6:C + 10], targ[..., C + 1:C + 5])
    bestbox = (iou_b2 > iou_b1).astype(jnp.float32)
    exists = targ[..., C:C + 1]

    box_pred = exists * (bestbox * pred[..., C + 6:C + 10]
                         + (1.0 - bestbox) * pred[..., C + 1:C + 5])
    box_targ = exists * targ[..., C + 1:C + 5]
    bp_xy, bt_xy = box_pred[..., 0:2], box_targ[..., 0:2]
    bp_wh = jnp.sign(box_pred[..., 2:4]) * jnp.sqrt(jnp.abs(box_pred[..., 2:4] + EPS))
    bt_wh = jnp.sqrt(box_targ[..., 2:4])
    box_loss = jnp.sum((bp_xy - bt_xy) ** 2) + jnp.sum((bp_wh - bt_wh) ** 2)

    pred_box = bestbox * pred[..., C + 5:C + 6] + (1.0 - bestbox) * pred[..., C:C + 1]
    object_loss = jnp.sum((exists * pred_box - exists * targ[..., C:C + 1]) ** 2)

    no_obj = jnp.sum(((1.0 - exists) * pred[..., C:C + 1]
                      - (1.0 - exists) * targ[..., C:C + 1]) ** 2)
    no_obj += jnp.sum(((1.0 - exists) * pred[..., C + 5:C + 6]
                       - (1.0 - exists) * targ[..., C:C + 1]) ** 2)

    class_loss = jnp.sum((exists * pred[..., :C] - exists * targ[..., :C]) ** 2)
    return LAMBDA_COORD * box_loss + object_loss + LAMBDA_NOOBJ * no_obj + class_loss


if __name__ == "__main__":
    key = jax.random.PRNGKey(0)

    # (batch, max_lanes_per_tile): n=2 -> single small tile; n=64 -> one big
    # tile; (64, 512) -> multi-tile "parallel" grid with per-tile partial
    # outputs and lane padding on the last tile.
    cases = [(2, TR_MAX), (64, TR_MAX), (64, 512)]
    for n, max_lanes in cases:
        key, k_pred, k_targ, k_exist = jax.random.split(key, 4)
        predictions = jax.random.normal(k_pred, (n, S * S * D), dtype=jnp.float32)
        targets = jax.random.uniform(k_targ, (n, S, S, D), dtype=jnp.float32)
        obj_mask = (jax.random.uniform(k_exist, (n, S, S, 1)) > 0.5).astype(jnp.float32)
        targets = targets.at[..., C:C + 1].set(obj_mask)

        loss_fn = jax.jit(functools.partial(yolo_loss, max_lanes_per_tile=max_lanes))
        loss = jax.block_until_ready(loss_fn(predictions, targets))
        ref = jax.block_until_ready(_ref_loss(predictions, targets))

        assert jnp.isfinite(loss), "loss is not finite"
        rel = jnp.abs(loss - ref) / jnp.maximum(1.0, jnp.abs(ref))
        assert rel < 1e-3, (
            f"mismatch vs reference: kernel={loss} ref={ref} (n={n}, tile={max_lanes})")

    print("KERNEL_OK")
</pallas_src>

<mosaic_0001>
module attributes {stable_mosaic.version = 11 : i64} {
  func.func @yolo_loss_kernel(%arg0: i32, %arg1: memref<30x128xf32, #tpu.memory_space<vmem>>, %arg2: memref<25x128xf32, #tpu.memory_space<vmem>>, %arg3: memref<1x128xf32, #tpu.memory_space<vmem>>) attributes {dimension_semantics = [#tpu.dimension_semantics<parallel>], iteration_bounds = array<i64: 1>, scalar_prefetch = 0 : i64, scratch_operands = 0 : i64, tpu.core_type = #tpu.core_type<tc>, window_params = [{transform_indices = @transform_0, window_bounds = array<i64: 30, 128>}, {transform_indices = @transform_1, window_bounds = array<i64: 25, 128>}, {transform_indices = @transform_2, window_bounds = array<i64: 1, 128>}]} {
    %c0 = arith.constant 0 : index
    %c0_0 = arith.constant 0 : index
    %0 = vector.load %arg1[%c0, %c0_0] : memref<30x128xf32, #tpu.memory_space<vmem>>, vector<30x128xf32>
    %c0_1 = arith.constant 0 : index
    %c0_2 = arith.constant 0 : index
    %1 = vector.load %arg2[%c0_1, %c0_2] : memref<25x128xf32, #tpu.memory_space<vmem>>, vector<25x128xf32>
    %2 = vector.extract_strided_slice %0 {offsets = [0, 0], sizes = [20, 128], strides = [1, 1]} : vector<30x128xf32> to vector<20x128xf32>
    %3 = vector.extract_strided_slice %0 {offsets = [20, 0], sizes = [1, 128], strides = [1, 1]} : vector<30x128xf32> to vector<1x128xf32>
    %4 = vector.extract_strided_slice %0 {offsets = [21, 0], sizes = [4, 128], strides = [1, 1]} : vector<30x128xf32> to vector<4x128xf32>
    %5 = vector.extract_strided_slice %0 {offsets = [25, 0], sizes = [1, 128], strides = [1, 1]} : vector<30x128xf32> to vector<1x128xf32>
    %6 = vector.extract_strided_slice %0 {offsets = [26, 0], sizes = [4, 128], strides = [1, 1]} : vector<30x128xf32> to vector<4x128xf32>
    %7 = vector.extract_strided_slice %1 {offsets = [0, 0], sizes = [20, 128], strides = [1, 1]} : vector<25x128xf32> to vector<20x128xf32>
    %8 = vector.extract_strided_slice %1 {offsets = [20, 0], sizes = [1, 128], strides = [1, 1]} : vector<25x128xf32> to vector<1x128xf32>
    %9 = vector.extract_strided_slice %1 {offsets = [21, 0], sizes = [4, 128], strides = [1, 1]} : vector<25x128xf32> to vector<4x128xf32>
    %10 = arith.mulf %8, %8 : vector<1x128xf32>
    %cst = arith.constant 1.000000e+00 : f32
    %11 = vector.broadcast %cst : f32 to vector<1x128xf32>
    %12 = arith.subf %11, %8 : vector<1x128xf32>
    %13 = arith.mulf %12, %12 : vector<1x128xf32>
    %14 = vector.extract_strided_slice %9 {offsets = [0, 0], sizes = [1, 128], strides = [1, 1]} : vector<4x128xf32> to vector<1x128xf32>
    %15 = vector.extract_strided_slice %9 {offsets = [1, 0], sizes = [1, 128], strides = [1, 1]} : vector<4x128xf32> to vector<1x128xf32>
    %16 = vector.extract_strided_slice %9 {offsets = [2, 0], sizes = [1, 128], strides = [1, 1]} : vector<4x128xf32> to vector<1x128xf32>
    %17 = vector.extract_strided_slice %9 {offsets = [3, 0], sizes = [1, 128], strides = [1, 1]} : vector<4x128xf32> to vector<1x128xf32>
    %cst_3 = arith.constant 5.000000e-01 : f32
    %18 = vector.broadcast %cst_3 : f32 to vector<1x128xf32>
    %19 = arith.mulf %16, %18 : vector<1x128xf32>
    %20 = arith.subf %14, %19 : vector<1x128xf32>
    %cst_4 = arith.constant 5.000000e-01 : f32
    %21 = vector.broadcast %cst_4 : f32 to vector<1x128xf32>
    %22 = arith.mulf %17, %21 : vector<1x128xf32>
    %23 = arith.subf %15, %22 : vector<1x128xf32>
    %cst_5 = arith.constant 5.000000e-01 : f32
    %24 = vector.broadcast %cst_5 : f32 to vector<1x128xf32>
    %25 = arith.mulf %16, %24 : vector<1x128xf32>
    %26 = arith.addf %14, %25 : vector<1x128xf32>
    %cst_6 = arith.constant 5.000000e-01 : f32
    %27 = vector.broadcast %cst_6 : f32 to vector<1x128xf32>
    %28 = arith.mulf %17, %27 : vector<1x128xf32>
    %29 = arith.addf %15, %28 : vector<1x128xf32>
    %30 = vector.extract_strided_slice %4 {offsets = [0, 0], sizes = [1, 128], strides = [1, 1]} : vector<4x128xf32> to vector<1x128xf32>
    %31 = vector.extract_strided_slice %4 {offsets = [1, 0], sizes = [1, 128], strides = [1, 1]} : vector<4x128xf32> to vector<1x128xf32>
    %32 = vector.extract_strided_slice %4 {offsets = [2, 0], sizes = [1, 128], strides = [1, 1]} : vector<4x128xf32> to vector<1x128xf32>
    %33 = vector.extract_strided_slice %4 {offsets = [3, 0], sizes = [1, 128], strides = [1, 1]} : vector<4x128xf32> to vector<1x128xf32>
    %cst_7 = arith.constant 5.000000e-01 : f32
    %34 = vector.broadcast %cst_7 : f32 to vector<1x128xf32>
    %35 = arith.mulf %32, %34 : vector<1x128xf32>
    %36 = arith.subf %30, %35 : vector<1x128xf32>
    %cst_8 = arith.constant 5.000000e-01 : f32
    %37 = vector.broadcast %cst_8 : f32 to vector<1x128xf32>
    %38 = arith.mulf %33, %37 : vector<1x128xf32>
    %39 = arith.subf %31, %38 : vector<1x128xf32>
    %cst_9 = arith.constant 5.000000e-01 : f32
    %40 = vector.broadcast %cst_9 : f32 to vector<1x128xf32>
    %41 = arith.mulf %32, %40 : vector<1x128xf32>
    %42 = arith.addf %30, %41 : vector<1x128xf32>
    %cst_10 = arith.constant 5.000000e-01 : f32
    %43 = vector.broadcast %cst_10 : f32 to vector<1x128xf32>
    %44 = arith.mulf %33, %43 : vector<1x128xf32>
    %45 = arith.addf %31, %44 : vector<1x128xf32>
    %46 = arith.minimumf %42, %26 : vector<1x128xf32>
    %47 = arith.maximumf %36, %20 : vector<1x128xf32>
    %48 = arith.subf %46, %47 : vector<1x128xf32>
    %49 = arith.minimumf %45, %29 : vector<1x128xf32>
    %50 = arith.maximumf %39, %23 : vector<1x128xf32>
    %51 = arith.subf %49, %50 : vector<1x128xf32>
    %cst_11 = arith.constant 0.000000e+00 : f32
    %52 = vector.broadcast %cst_11 : f32 to vector<1x128xf32>
    %53 = arith.maximumf %48, %52 : vector<1x128xf32>
    %cst_12 = arith.constant 0.000000e+00 : f32
    %54 = vector.broadcast %cst_12 : f32 to vector<1x128xf32>
    %55 = arith.maximumf %51, %54 : vector<1x128xf32>
    %56 = arith.mulf %53, %55 : vector<1x128xf32>
    %57 = arith.subf %42, %36 : vector<1x128xf32>
    %58 = arith.subf %45, %39 : vector<1x128xf32>
    %59 = arith.mulf %57, %58 : vector<1x128xf32>
    %60 = math.absf %59 : vector<1x128xf32>
    %61 = arith.subf %26, %20 : vector<1x128xf32>
    %62 = arith.subf %29, %23 : vector<1x128xf32>
    %63 = arith.mulf %61, %62 : vector<1x128xf32>
    %64 = math.absf %63 : vector<1x128xf32>
    %65 = arith.addf %60, %64 : vector<1x128xf32>
    %66 = arith.subf %65, %56 : vector<1x128xf32>
    %67 = vector.extract_strided_slice %6 {offsets = [0, 0], sizes = [1, 128], strides = [1, 1]} : vector<4x128xf32> to vector<1x128xf32>
    %68 = vector.extract_strided_slice %6 {offsets = [1, 0], sizes = [1, 128], strides = [1, 1]} : vector<4x128xf32> to vector<1x128xf32>
    %69 = vector.extract_strided_slice %6 {offsets = [2, 0], sizes = [1, 128], strides = [1, 1]} : vector<4x128xf32> to vector<1x128xf32>
    %70 = vector.extract_strided_slice %6 {offsets = [3, 0], sizes = [1, 128], strides = [1, 1]} : vector<4x128xf32> to vector<1x128xf32>
    %cst_13 = arith.constant 5.000000e-01 : f32
    %71 = vector.broadcast %cst_13 : f32 to vector<1x128xf32>
    %72 = arith.mulf %69, %71 : vector<1x128xf32>
    %73 = arith.subf %67, %72 : vector<1x128xf32>
    %cst_14 = arith.constant 5.000000e-01 : f32
    %74 = vector.broadcast %cst_14 : f32 to vector<1x128xf32>
    %75 = arith.mulf %70, %74 : vector<1x128xf32>
    %76 = arith.subf %68, %75 : vector<1x128xf32>
    %cst_15 = arith.constant 5.000000e-01 : f32
    %77 = vector.broadcast %cst_15 : f32 to vector<1x128xf32>
    %78 = arith.mulf %69, %77 : vector<1x128xf32>
    %79 = arith.addf %67, %78 : vector<1x128xf32>
    %cst_16 = arith.constant 5.000000e-01 : f32
    %80 = vector.broadcast %cst_16 : f32 to vector<1x128xf32>
    %81 = arith.mulf %70, %80 : vector<1x128xf32>
    %82 = arith.addf %68, %81 : vector<1x128xf32>
    %83 = arith.minimumf %79, %26 : vector<1x128xf32>
    %84 = arith.maximumf %73, %20 : vector<1x128xf32>
    %85 = arith.subf %83, %84 : vector<1x128xf32>
    %86 = arith.minimumf %82, %29 : vector<1x128xf32>
    %87 = arith.maximumf %76, %23 : vector<1x128xf32>
    %88 = arith.subf %86, %87 : vector<1x128xf32>
    %cst_17 = arith.constant 0.000000e+00 : f32
    %89 = vector.broadcast %cst_17 : f32 to vector<1x128xf32>
    %90 = arith.maximumf %85, %89 : vector<1x128xf32>
    %cst_18 = arith.constant 0.000000e+00 : f32
    %91 = vector.broadcast %cst_18 : f32 to vector<1x128xf32>
    %92 = arith.maximumf %88, %91 : vector<1x128xf32>
    %93 = arith.mulf %90, %92 : vector<1x128xf32>
    %94 = arith.subf %79, %73 : vector<1x128xf32>
    %95 = arith.subf %82, %76 : vector<1x128xf32>
    %96 = arith.mulf %94, %95 : vector<1x128xf32>
    %97 = math.absf %96 : vector<1x128xf32>
    %98 = arith.subf %26, %20 : vector<1x128xf32>
    %99 = arith.subf %29, %23 : vector<1x128xf32>
    %100 = arith.mulf %98, %99 : vector<1x128xf32>
    %101 = math.absf %100 : vector<1x128xf32>
    %102 = arith.addf %97, %101 : vector<1x128xf32>
    %103 = arith.subf %102, %93 : vector<1x128xf32>
    %cst_19 = arith.constant 9.99999997E-7 : f32
    %104 = vector.broadcast %cst_19 : f32 to vector<1x128xf32>
    %105 = arith.addf %66, %104 : vector<1x128xf32>
    %106 = arith.mulf %93, %105 : vector<1x128xf32>
    %cst_20 = arith.constant 9.99999997E-7 : f32
    %107 = vector.broadcast %cst_20 : f32 to vector<1x128xf32>
    %108 = arith.addf %103, %107 : vector<1x128xf32>
    %109 = arith.mulf %56, %108 : vector<1x128xf32>
    %110 = arith.cmpf ogt, %106, %109 : vector<1x128xf32>
    %111 = vector.shape_cast %110 : vector<1x128xi1> to vector<1x128xi1>
    %112 = vector.broadcast %111 : vector<1x128xi1> to vector<4x128xi1>
    %113 = arith.select %112, %6, %4 : vector<4x128xi1>, vector<4x128xf32>
    %114 = arith.select %110, %5, %3 : vector<1x128xi1>, vector<1x128xf32>
    %115 = vector.extract_strided_slice %113 {offsets = [0, 0], sizes = [2, 128], strides = [1, 1]} : vector<4x128xf32> to vector<2x128xf32>
    %116 = vector.extract_strided_slice %9 {offsets = [0, 0], sizes = [2, 128], strides = [1, 1]} : vector<4x128xf32> to vector<2x128xf32>
    %117 = arith.subf %115, %116 : vector<2x128xf32>
    %118 = arith.mulf %117, %117 : vector<2x128xf32>
    %cst_21 = arith.constant dense<0.000000e+00> : vector<128xf32>
    %119 = vector.multi_reduction <add>, %118, %cst_21 [0] : vector<2x128xf32> to vector<128xf32>
    %120 = vector.shape_cast %119 : vector<128xf32> to vector<1x128xf32>
    %121 = vector.extract_strided_slice %113 {offsets = [2, 0], sizes = [2, 128], strides = [1, 1]} : vector<4x128xf32> to vector<2x128xf32>
    %122 = vector.broadcast %8 : vector<1x128xf32> to vector<2x128xf32>
    %123 = arith.mulf %122, %121 : vector<2x128xf32>
    %124 = vector.extract_strided_slice %9 {offsets = [2, 0], sizes = [2, 128], strides = [1, 1]} : vector<4x128xf32> to vector<2x128xf32>
    %125 = vector.broadcast %8 : vector<1x128xf32> to vector<2x128xf32>
    %126 = arith.mulf %125, %124 : vector<2x128xf32>
    %cst_22 = arith.constant 0.000000e+00 : f32
    %127 = vector.broadcast %cst_22 : f32 to vector<2x128xf32>
    %128 = arith.cmpf ogt, %123, %127 : vector<2x128xf32>
    %cst_23 = arith.constant 0.000000e+00 : f32
    %129 = vector.broadcast %cst_23 : f32 to vector<2x128xf32>
    %130 = arith.cmpf olt, %123, %129 : vector<2x128xf32>
    %cst_24 = arith.constant -1.000000e+00 : f32
    %cst_25 = arith.constant 0.000000e+00 : f32
    %131 = vector.broadcast %cst_24 : f32 to vector<2x128xf32>
    %132 = vector.broadcast %cst_25 : f32 to vector<2x128xf32>
    %133 = arith.select %130, %131, %132 : vector<2x128xi1>, vector<2x128xf32>
    %cst_26 = arith.constant 1.000000e+00 : f32
    %134 = vector.broadcast %cst_26 : f32 to vector<2x128xf32>
    %135 = arith.select %128, %134, %133 : vector<2x128xi1>, vector<2x128xf32>
    %cst_27 = arith.constant 9.99999997E-7 : f32
    %136 = vector.broadcast %cst_27 : f32 to vector<2x128xf32>
    %137 = arith.addf %123, %136 : vector<2x128xf32>
    %138 = math.absf %137 : vector<2x128xf32>
    %139 = math.sqrt %138 : vector<2x128xf32>
    %140 = arith.mulf %135, %139 : vector<2x128xf32>
    %141 = math.sqrt %126 : vector<2x128xf32>
    %142 = arith.subf %140, %141 : vector<2x128xf32>
    %143 = arith.mulf %142, %142 : vector<2x128xf32>
    %cst_28 = arith.constant dense<0.000000e+00> : vector<128xf32>
    %144 = vector.multi_reduction <add>, %143, %cst_28 [0] : vector<2x128xf32> to vector<128xf32>
    %145 = vector.shape_cast %144 : vector<128xf32> to vector<1x128xf32>
    %146 = arith.subf %2, %7 : vector<20x128xf32>
    %147 = arith.mulf %146, %146 : vector<20x128xf32>
    %cst_29 = arith.constant dense<0.000000e+00> : vector<128xf32>
    %148 = vector.multi_reduction <add>, %147, %cst_29 [0] : vector<20x128xf32> to vector<128xf32>
    %149 = vector.shape_cast %148 : vector<128xf32> to vector<1x128xf32>
    %150 = arith.subf %114, %8 : vector<1x128xf32>
    %151 = arith.subf %3, %8 : vector<1x128xf32>
    %152 = arith.subf %5, %8 : vector<1x128xf32>
    %cst_30 = arith.constant 5.000000e+00 : f32
    %153 = vector.broadcast %cst_30 : f32 to vector<1x128xf32>
    %154 = arith.mulf %153, %120 : vector<1x128xf32>
    %155 = arith.addf %149, %154 : vector<1x128xf32>
    %156 = arith.mulf %150, %150 : vector<1x128xf32>
    %157 = arith.addf %155, %156 : vector<1x128xf32>
    %158 = arith.mulf %10, %157 : vector<1x128xf32>
    %cst_31 = arith.constant 5.000000e+00 : f32
    %159 = vector.broadcast %cst_31 : f32 to vector<1x128xf32>
    %160 = arith.mulf %159, %145 : vector<1x128xf32>
    %161 = arith.addf %158, %160 : vector<1x128xf32>
    %cst_32 = arith.constant 5.000000e-01 : f32
    %162 = vector.broadcast %cst_32 : f32 to vector<1x128xf32>
    %163 = arith.mulf %162, %13 : vector<1x128xf32>
    %164 = arith.mulf %151, %151 : vector<1x128xf32>
    %165 = arith.mulf %152, %152 : vector<1x128xf32>
    %166 = arith.addf %164, %165 : vector<1x128xf32>
    %167 = arith.mulf %163, %166 : vector<1x128xf32>
    %168 = arith.addf %161, %167 : vector<1x128xf32>
    %cst_33 = arith.constant dense<0.000000e+00> : vector<1xf32>
    %169 = vector.multi_reduction <add>, %168, %cst_33 [1] : vector<1x128xf32> to vector<1xf32>
    %170 = vector.shape_cast %169 : vector<1xf32> to vector<1x1xf32>
    %171 = vector.shape_cast %170 : vector<1x1xf32> to vector<1x1xf32>
    %172 = vector.broadcast %171 : vector<1x1xf32> to vector<1x128xf32>
    %c0_34 = arith.constant 0 : index
    %c0_35 = arith.constant 0 : index
    %173 = vector.load %arg3[%c0_34, %c0_35] : memref<1x128xf32, #tpu.memory_space<vmem>>, vector<1x128xf32>
    tpu.vector_store %arg3[%c0_34, %c0_35], %172 {strides = array<i32>} : memref<1x128xf32, #tpu.memory_space<vmem>>, vector<1x128xf32>,
    return
  }
  func.func @transform_0(%arg0: i32) -> (i32, i32) {
    %c0_i32 = arith.constant 0 : i32
    %c0_i32_0 = arith.constant 0 : i32
    return %c0_i32, %arg0 : i32, i32
  }
  func.func @transform_1(%arg0: i32) -> (i32, i32) {
    %c0_i32 = arith.constant 0 : i32
    %c0_i32_0 = arith.constant 0 : i32
    return %c0_i32, %arg0 : i32, i32
  }
  func.func @transform_2(%arg0: i32) -> (i32, i32) {
    %c0_i32 = arith.constant 0 : i32
    %c0_i32_0 = arith.constant 0 : i32
    return %c0_i32, %arg0 : i32, i32
  }
}

</mosaic_0001>

<llo_original>
// kernel: yolo_loss.1
$region0: #{yolo_loss.1}
  #allocation0 [shape = 'u32[]', space=smem, size = 0x4, offset = 0x4, fixed_abs, tag = 'smem constant byte address 0x4 - core index']
  #allocation1 [shape = 'u32[144,128]{1,0:T(1,128)}', space=vmem, size = 0x12000, scoped, tag = 'internal scratch']
  %s0 = inlined_call_operand.vmem [shape: f32[30,128], index: 0, kind: input, shape index: {}]
  %s1 = inlined_call_operand.vmem [shape: f32[25,128], index: 1, kind: input, shape index: {}]
  %s2 = inlined_call_operand.hbm [shape: f32[1,128], index: 2, kind: output, shape index: {}]
  %s3 = sld [smem:[#allocation0]]
  $region18: #{yolo_loss.1} parent=0
    _
  %s5 = ssub.s32 1, %s3
  %s6 = scalar_select 0, %s5, %s3
  $region1: #{yolo_loss.1} parent=0
    #allocation2 [shape = 'u8[512]{0}', space=vmem, size = 0x400, scoped, tag = 'output window, operand 0, single buffered']
    #allocation3 [shape = 's32[1]{0}', space=sflag, size = 0x4, scoped, tag = 'scoped memory for yolo_loss.1']
    %7 = vsyncpa [#allocation3], 0
    // Predicated region
    $region2: #{yolo_loss.1} parent=1 // pred_check
      _
    $region3: #{yolo_loss.1} parent=1 // pred_check_branch
      %9 = sbr.rel (0) target = $region5
    $region4: #{yolo_loss.1} parent=1 // pred_region
      _
    $region5: #{yolo_loss.1} parent=1 // pred_fallthru
      _
    // Predicated region
    $region6: #{yolo_loss.1} parent=1 // pred_check
      _
    $region7: #{yolo_loss.1} parent=1 // pred_check_branch
      %11 = sbr.rel (0) target = $region9
    $region8: #{yolo_loss.1} parent=1 // pred_region
      _
    $region9: #{yolo_loss.1} parent=1 // pred_fallthru
      _
    %v12 = vld [vmem:[%s0] sm:$0xff]
    %v13 = vld [vmem:[%s0 + $0x8] sm:$0xff]
    %v14 = vld [vmem:[%s0 + $0x10] sm:$0xff]
    %v15 = vld [vmem:[%s0 + $0x18] sm:$0x3f]
    %v16 = vld [vmem:[%s1] sm:$0xff]
    %v17 = vld [vmem:[%s1 + $0x8] sm:$0xff]
    %v18 = vld [vmem:[%s1 + $0x10] sm:$0xff]
    %v19 = vld [vmem:[%s1 + $0x18] sm:$0x1]
    %v20 = vmul.f32 %v18, %v18
    %v21 = vsub.f32 1.0, %v18
    %v22 = vmul.f32 %v21, %v21
    %v23 = vmul.f32 %v18, 0.5
    %v25 = vrot.slane %v23, 2
    %v27 = vsub.f32 %v18, %v25
    %v28 = vmul.f32 %v19, 0.5
    %v30 = vrot.slane %v28, 2
    %v32 = vsub.f32 %v18, %v30
    %v33 = vadd.f32 %v18, %v25
    %v34 = vadd.f32 %v18, %v30
    %v35 = vmul.f32 %v14, 0.5
    %v37 = vrot.slane %v35, 2
    %v39 = vsub.f32 %v14, %v37
    %v40 = vmul.f32 %v15, 0.5
    %v42 = vrot.slane %v40, 2
    %v44 = vsub.f32 %v14, %v42
    %v45 = vadd.f32 %v14, %v37
    %v46 = vadd.f32 %v14, %v42
    %v47 = vmin.f32 %v45, %v33
    %v48 = vmax.f32 %v39, %v27
    %v49 = vsub.f32 %v47, %v48
    %v50 = vmin.f32 %v46, %v34
    %v51 = vmax.f32 %v44, %v32
    %v52 = vsub.f32 %v50, %v51
    %v53 = vmax.f32 %v49, 0.0
    %v54 = vmax.f32 %v52, 0.0
    %v56 = vrot.slane %v54, 1
    %v58 = vmul.f32 %v53, %v56
    %v59 = vsub.f32 %v45, %v39
    %v60 = vsub.f32 %v46, %v44
    %v62 = vrot.slane %v60, 1
    %v64 = vmul.f32 %v59, %v62
    %v65 = vand.u32 2147483647, %v64
    %v66 = vsub.f32 %v33, %v27
    %v67 = vsub.f32 %v34, %v32
    %v69 = vrot.slane %v67, 1
    %v71 = vmul.f32 %v66, %v69
    %v72 = vand.u32 2147483647, %v71
    %v73 = vadd.f32 %v65, %v72
    %v74 = vsub.f32 %v73, %v58
    %v75 = vsub.f32 %v15, %v42
    %v76 = vadd.f32 %v15, %v42
    %v78 = vrot.slane %v33, 3
    %v80 = vmin.f32 %v76, %v78
    %v82 = vrot.slane %v27, 3
    %v84 = vmax.f32 %v75, %v82
    %v85 = vsub.f32 %v80, %v84
    %v87 = vrot.slane %v34, 3
    %v89 = vmin.f32 %v76, %v87
    %v91 = vrot.slane %v32, 3
    %v93 = vmax.f32 %v75, %v91
    %v94 = vsub.f32 %v89, %v93
    %v95 = vmax.f32 %v85, 0.0
    %v96 = vmax.f32 %v94, 0.0
    %v98 = vrot.slane %v96, 1
    %v100 = vmul.f32 %v95, %v98
    %v101 = vsub.f32 %v76, %v75
    %v103 = vrot.slane %v101, 1
    %v105 = vmul.f32 %v101, %v103
    %v106 = vand.u32 2147483647, %v105
    %v108 = vrot.slane %v72, 3
    %v110 = vadd.f32 %v106, %v108
    %v111 = vsub.f32 %v110, %v100
    %v112 = vadd.f32 %v74, 1e-06
    %v114 = vrot.slane %v112, 3
    %v116 = vmul.f32 %v100, %v114
    %v117 = vadd.f32 %v111, 1e-06
    %v119 = vrot.slane %v117, 5
    %v121 = vmul.f32 %v58, %v119
    %v123 = vrot.slane %v121, 3
    %vm125 = vcmp.gt.f32.partialorder %v116, %v123
    %v126 = vsel %vm125, 1, 0
    %v127 = vlaneseq
    %v128 = vshrl.u32 %v127, 7
    %v129 = vsub.s32 2, %v128
    %v130 = vrot.slane %v126, %v129
    %vm131 = vcmp.eq.s32.totalorder %v130, 1
    %vm134 = vcmask 1044480
    %v135 = vrot.slane %v14, 3
    %v136 = vrot.slane %v15, 3
    %v137 = vsel %vm134, %v135, %v136
    %v139 = vsel %vm131, %v15, %v137
    %v140 = vrot.slane %v15, 7
    %v142 = vrot.slane %v14, 2
    %v144 = vsel %vm125, %v140, %v142
    %v146 = vrot.slane %v18, 3
    %v148 = vsub.f32 %v139, %v146
    %v149 = vmul.f32 %v148, %v148
    %v151 = vrot.slane %v149, 2
    %vm153 = vcmask 1041408
    %v154 = vsel %vm153, %v151, 0.0
    %v155 = vrot.slane %v154, 4
    %v156 = vadd.f32 %v154, %v155
    %v157 = vrot.slane %v156, 2
    %v158 = vadd.f32 %v156, %v157
    %v159 = vrot.slane %v158, 1
    %v160 = vadd.f32 %v158, %v159
    %v161 = vlaneseq
    %v162 = vshrl.u32 %v161, 7
    %v163 = vsub.s32 4, %v162
    %v164 = vrot.slane %v18, %v163
    %v165 = vmul.f32 %v164, %v139
    %v166 = vmul.f32 %v164, %v18
    %v167 = vmul.f32 %v164, %v19
    %vm168 = vcmp.gt.f32.partialorder %v165, 0.0
    %vm169 = vcmp.lt.f32.partialorder %v165, 0.0
    %v170 = vsel %vm169, -1.0, 0.0
    %v171 = vsel %vm168, 1.0, %v170
    %v172 = vadd.f32 %v165, 1e-06
    %v173 = vand.u32 2147483647, %v172
    %v174 = vrsqrt.pop %v173
    %v175 = vmul.f32 %v173, %v174
    %vm176 = vcmp.eq.f32.partialorder %v173, inf
    %v177 = vsel %vm176, %v173, %v175
    %vm178 = vcmp.eq.f32.partialorder %v173, 0.0
    %v179 = vand.u32 %v173, 2147483648
    %v180 = vsel %vm178, %v179, %v177
    %v181 = vmul.f32 %v171, %v180
    %v182 = vrsqrt.pop %v166
    %v183 = vmul.f32 %v166, %v182
    %vm184 = vcmp.eq.f32.partialorder %v166, inf
    %v185 = vsel %vm184, %v166, %v183
    %vm186 = vcmp.eq.f32.partialorder %v166, 0.0
    %v187 = vand.u32 %v166, 2147483648
    %v188 = vsel %vm186, %v187, %v185
    %v189 = vrsqrt.pop %v167
    %v190 = vmul.f32 %v167, %v189
    %vm191 = vcmp.eq.f32.partialorder %v167, inf
    %v192 = vsel %vm191, %v167, %v190
    %vm193 = vcmp.eq.f32.partialorder %v167, 0.0
    %v194 = vand.u32 %v167, 2147483648
    %v195 = vsel %vm193, %v194, %v192
    %v198 = vrot.slane %v188, 3
    %v199 = vrot.slane %v195, 3
    %v200 = vsel %vm134, %v198, %v199
    %v202 = vsub.f32 %v181, %v200
    %v203 = vmul.f32 %v202, %v202
    %v205 = vrot.slane %v203, 4
    %v207 = vsel %vm153, %v205, 0.0
    %v208 = vrot.slane %v207, 4
    %v209 = vadd.f32 %v207, %v208
    %v210 = vrot.slane %v209, 2
    %v211 = vadd.f32 %v209, %v210
    %v212 = vrot.slane %v211, 1
    %v213 = vadd.f32 %v211, %v212
    %v214 = vsub.f32 %v12, %v16
    %v215 = vsub.f32 %v13, %v17
    %v216 = vsub.f32 %v14, %v18
    %v217 = vmul.f32 %v214, %v214
    %v218 = vmul.f32 %v215, %v215
    %v219 = vmul.f32 %v216, %v216
    %v220 = vadd.f32 %v217, %v218
    %vm221 = vcmask 1043456
    %v222 = vsel %vm221, %v219, 0.0
    %v223 = vadd.f32 %v220, %v222
    %v224 = vrot.slane %v223, 4
    %v225 = vadd.f32 %v223, %v224
    %v226 = vrot.slane %v225, 2
    %v227 = vadd.f32 %v225, %v226
    %v228 = vrot.slane %v227, 1
    %v229 = vadd.f32 %v227, %v228
    %v230 = vrot.slane %v18, 2
    %v232 = vsub.f32 %v144, %v230
    %v233 = vsub.f32 %v15, %v146
    %v234 = vmul.f32 %v160, 5.0
    %v235 = vadd.f32 %v229, %v234
    %v236 = vmul.f32 %v232, %v232
    %v237 = vadd.f32 %v235, %v236
    %v239 = vrot.slane %v237, 6
    %v241 = vmul.f32 %v20, %v239
    %v242 = vmul.f32 %v213, 5.0
    %v243 = vadd.f32 %v241, %v242
    %v244 = vmul.f32 %v22, 0.5
    %v245 = vmul.f32 %v233, %v233
    %v247 = vrot.slane %v245, 5
    %v249 = vadd.f32 %v219, %v247
    %v250 = vmul.f32 %v244, %v249
    %v251 = vadd.f32 %v243, %v250
    %vm252 = vcmask 1044484
    %v253 = vsel %vm252, %v251, 0.0
    %254 = vadd.xlane.f32.xlu0 %v253
    %v255 = vpop.xlane.xlu0 %254
    %256 = vst [vmem:[#allocation2 - $0x4] sm:$0x10] %v255
    // Predicated region
    $region10: #{yolo_loss.1} parent=1 // pred_check
      _
    $region11: #{yolo_loss.1} parent=1 // pred_check_branch
      %258 = sbr.rel (0) target = $region13
    $region12: #{yolo_loss.1} parent=1 // pred_region
      %s260 = ssub.s32 16, 16
      %261 = vsyncadd [#allocation3], %s260
      %s263 = sshll.u32 [#allocation2], 4
      %s264 = int_to_ptr.vmem [resolvable:$true] %s263
      %266 = dma.vmem_to_hbm [thread:$0]  %s264, 16, %s2, [#allocation3]
    $region13: #{yolo_loss.1} parent=1 // pred_fallthru
      _
    // Predicated region
    $region14: #{yolo_loss.1} parent=1 // pred_check
      _
    $region15: #{yolo_loss.1} parent=1 // pred_check_branch
      %268 = sbr.rel (0) target = $region17
    $region16: #{yolo_loss.1} parent=1 // pred_region
      %269 = dma.done [#allocation3], 16
    $region17: #{yolo_loss.1} parent=1 // pred_fallthru
      _
    %270 = vsyncpa [#allocation3], 1

</llo_original>
